<compile_context>
chip_gen: v7x
topology: tpu7x:2x2x1
jax: 0.10.0
libtpu: 0.0.40
codegen_flags: <defaults>
</compile_context>

<pallas_src>
import functools

import jax
import jax.numpy as jnp
from jax import lax
from jax.experimental import pallas as pl
from jax.experimental.pallas import tpu as pltpu
import numpy as np

EPS = 1e-5


# --------------------------------- kernel -----------------------------------
def residual_block_kernel(H, x_ref, w1_ref, w2_ref, off_ref, out_ref):
    """Fused conv3x3 -> BN -> ReLU -> conv3x3 -> BN  (+)  conv1x1 -> BN, ReLU.

      x_ref   : (M, W*Cin)        M = (images in this block) * H, row-flattened
      w1_ref  : (W*Cin, 4*WC)     bf16: [conv1 dy=0 | dy=1 | dy=2 | 1x1 shortcut]
                                  bands, BN1/BN3 scales folded into columns
      w2_ref  : (WC, 3*WC)        bf16: [conv2 dy=0 | dy=1 | dy=2] bands, BN2 scale folded
      off_ref : (2, WC)           f32:  row 0 = bn1 offset, row 1 = bn2+bn3 offsets
      out_ref : (M, WC)           WC = W*Cout (lane-dense, 128 here)
    """
    M, WC = out_ref.shape

    x = x_ref[...].astype(jnp.bfloat16)                      # (M, W*Cin)

    # Edge masks, hoisted once and shared by both convs.  row % H handles
    # multiple images stacked along M (no dy leakage across images).
    rowmod = lax.broadcasted_iota(jnp.int32, (M, WC), 0) % H
    is_top = rowmod == 0
    is_bot = rowmod == H - 1

    # ---- conv1 (3 dy bands) + fused 1x1 shortcut: ONE wide MXU matmul ----
    q = jnp.dot(x, w1_ref[...], preferred_element_type=jnp.float32)   # (M, 4*WC)
    qt = q[:, :WC]             # dy = 0  (needs shift down)
    qc = q[:, WC:2 * WC]       # dy = 1
    qb = q[:, 2 * WC:3 * WC]   # dy = 2  (needs shift up)
    qs = q[:, 3 * WC:]         # 1x1 shortcut (BN3 scale already folded in)
    conv1 = (qc
             + jnp.where(is_top, 0.0, pltpu.roll(qt, shift=1, axis=0))
             + jnp.where(is_bot, 0.0, pltpu.roll(qb, shift=M - 1, axis=0)))
    h1 = jnp.maximum(conv1 + off_ref[0:1, :], 0.0)            # bn1 offset + relu

    # ---- conv2 (3 dy bands): one matmul, BN2 scale pre-folded ----
    r = jnp.dot(h1.astype(jnp.bfloat16), w2_ref[...],
                preferred_element_type=jnp.float32)            # (M, 3*WC)
    rt, rc, rb = r[:, :WC], r[:, WC:2 * WC], r[:, 2 * WC:]
    conv2 = (rc
             + jnp.where(is_top, 0.0, pltpu.roll(rt, shift=1, axis=0))
             + jnp.where(is_bot, 0.0, pltpu.roll(rb, shift=M - 1, axis=0)))

    # residual add (+ combined bn2+bn3 offsets) + relu; unmasked lane-dense store.
    out_ref[...] = jnp.maximum(conv2 + qs + off_ref[1:2, :], 0.0).astype(out_ref.dtype)


# ---------------------- one-time weight preprocessing ------------------------
def precompute_weights(params, W):
    """Build the fused, BN-folded, bf16 weight slabs (call ONCE at init)."""
    w1, w2, ws = params["w1"], params["w2"], params["ws"]
    Cout = w1.shape[-1]

    def fold_bn(bn):
        gamma, beta, mean, var = bn
        scale = gamma / jnp.sqrt(var + EPS)
        return scale, beta - mean * scale

    s1, o1 = fold_bn(params["bn1"])
    s2, o2 = fold_bn(params["bn2"])
    s3, o3 = fold_bn(params["bn3"])
    t1, t2, t3 = (jnp.tile(s, W) for s in (s1, s2, s3))       # lane layout x*Cout+co

    def banded(w_hwio, dy):
        # (3,3,Ci,Co) -> (W*Ci, W*Co) band for kernel row dy; dx shifts and the
        # x zero-padding are folded into the band structure.
        return sum(jnp.kron(jnp.eye(W, k=1 - dx, dtype=w_hwio.dtype), w_hwio[dy, dx])
                   for dx in range(3))

    # conv1 bands (+ 1x1 shortcut band), BN1/BN3 scales folded into columns.
    ws_band = jnp.kron(jnp.eye(W, dtype=ws.dtype), ws) * t3
    w1comb = jnp.concatenate(
        [banded(w1, 0) * t1, banded(w1, 1) * t1, banded(w1, 2) * t1, ws_band],
        axis=1).astype(jnp.bfloat16)                           # (W*Cin, 4*W*Cout)

    # conv2 bands, BN2 scale folded.
    w2comb = jnp.concatenate(
        [banded(w2, 0) * t2, banded(w2, 1) * t2, banded(w2, 2) * t2],
        axis=1).astype(jnp.bfloat16)                           # (W*Cout, 3*W*Cout)

    # Remaining per-lane offsets: bn1, and bn2+bn3 (pre-summed).
    off = jnp.stack([jnp.tile(o1, W), jnp.tile(o2 + o3, W)],
                    axis=0).astype(jnp.float32)                # (2, W*Cout)
    return w1comb, w2comb, off


# --------------------------------- forward -----------------------------------
@functools.partial(jax.jit, static_argnames=("num_chunks",))
def residual_block_forward(x_nchw, w1comb, w2comb, off, num_chunks=1):
    """x_nchw: (N, Cin, H, W) f32 -> (N, Cout, H, W) f32 (stride=1).

    num_chunks=1 merges the whole batch into the matmul M dimension (best on
    single-TC v5e/v6e); set num_chunks=2 on v7x to shard across both TCs once
    the batch grows (grid axis is marked "parallel").
    """
    N, Cin, H, W = x_nchw.shape
    WC = off.shape[1]
    Cout = WC // W
    M = N * H
    chunk_rows = M // num_chunks

    # NCHW -> (N*H, W*Cin) row-flattened, lane-oriented input (no padding).
    # TODO(synk): the transposes disappear if the surrounding model stays NHWC.
    x2 = jnp.transpose(x_nchw, (0, 2, 3, 1)).reshape(M, W * Cin)

    full = lambda a: pl.BlockSpec(a.shape, lambda g: (0, 0))
    # NOTE: weights are grid-invariant; at grid=(1,) pipeline buffering is moot
    # and total VMEM is <0.5 MiB, so no pl.Buffered(1) / vmem_limit overrides.

    out = pl.pallas_call(
        functools.partial(residual_block_kernel, H),
        out_shape=jax.ShapeDtypeStruct((M, WC), jnp.float32),
        grid_spec=pltpu.PrefetchScalarGridSpec(
            num_scalar_prefetch=0,
            grid=(num_chunks,),
            in_specs=[
                pl.BlockSpec((chunk_rows, W * Cin), lambda g: (g, 0)),
                full(w1comb), full(w2comb), full(off),
            ],
            out_specs=pl.BlockSpec((chunk_rows, WC), lambda g: (g, 0)),
        ),
        compiler_params=pltpu.CompilerParams(
            dimension_semantics=("parallel",)),    # megacore sharding on v7x
    )(x2, w1comb, w2comb, off)

    return jnp.transpose(out.reshape(N, H, W, Cout), (0, 3, 1, 2))


# ----------------------------- reference (plain JAX) -------------------------
def reference_forward(x_nchw, params):
    dn = ("NCHW", "OIHW", "NCHW")

    def conv(x, w_hwio, pad):
        w_oihw = jnp.transpose(w_hwio, (3, 2, 0, 1))
        return lax.conv_general_dilated(x, w_oihw, (1, 1), pad,
                                        dimension_numbers=dn)

    def bn(x, p):
        g, b, m, v = (a[None, :, None, None] for a in p)
        return (x - m) / jnp.sqrt(v + EPS) * g + b

    w1, w2, ws = params["w1"], params["w2"], params["ws"]
    ws_hwio = ws[None, None, :, :]
    out = jax.nn.relu(bn(conv(x_nchw, w1, [(1, 1), (1, 1)]), params["bn1"]))
    out = bn(conv(out, w2, [(1, 1), (1, 1)]), params["bn2"])
    sc = bn(conv(x_nchw, ws_hwio, [(0, 0), (0, 0)]), params["bn3"])
    return jax.nn.relu(out + sc)


# ----------------------------------- main -------------------------------------
if __name__ == "__main__":
    N, Cin, Cout, H, W = 2, 4, 8, 16, 16

    key = jax.random.PRNGKey(0)
    ks = jax.random.split(key, 16)

    def bn_params(k, c):
        k1, k2, k3, k4 = jax.random.split(k, 4)
        gamma = 1.0 + 0.1 * jax.random.normal(k1, (c,), jnp.float32)
        beta = 0.1 * jax.random.normal(k2, (c,), jnp.float32)
        mean = 0.1 * jax.random.normal(k3, (c,), jnp.float32)
        var = jnp.abs(jax.random.normal(k4, (c,), jnp.float32)) + 0.5
        return (gamma, beta, mean, var)

    params = {
        # HWIO layouts
        "w1": 0.1 * jax.random.normal(ks[0], (3, 3, Cin, Cout), jnp.float32),
        "w2": 0.1 * jax.random.normal(ks[1], (3, 3, Cout, Cout), jnp.float32),
        "ws": 0.1 * jax.random.normal(ks[2], (Cin, Cout), jnp.float32),
        "bn1": bn_params(ks[3], Cout),
        "bn2": bn_params(ks[4], Cout),
        "bn3": bn_params(ks[5], Cout),
    }

    x = jax.random.normal(ks[6], (N, Cin, H, W), jnp.float32)

    # One-time preprocessing (outside the hot jitted forward).
    w1comb, w2comb, off = precompute_weights(params, W)
    w1comb, w2comb, off = jax.block_until_ready((w1comb, w2comb, off))

    out = residual_block_forward(x, w1comb, w2comb, off)
    out = jax.block_until_ready(out)

    ref = jax.block_until_ready(reference_forward(x, params))
    assert out.shape == (N, Cout, H, W), out.shape
    # Tolerance loosened for bf16 MXU operands (f32 accumulation).
    np.testing.assert_allclose(np.asarray(out), np.asarray(ref),
                               atol=5e-2, rtol=5e-2)

    print("KERNEL_OK")
</pallas_src>

<mosaic_0001>
module attributes {stable_mosaic.version = 11 : i64} {
  func.func @residual_block_kernel(%arg0: i32, %arg1: memref<32x64xf32, #tpu.memory_space<vmem>>, %arg2: memref<64x512xbf16, #tpu.memory_space<vmem>>, %arg3: memref<128x384xbf16, #tpu.memory_space<vmem>>, %arg4: memref<2x128xf32, #tpu.memory_space<vmem>>, %arg5: memref<32x128xf32, #tpu.memory_space<vmem>>) attributes {dimension_semantics = [#tpu.dimension_semantics<parallel>], iteration_bounds = array<i64: 1>, scalar_prefetch = 0 : i64, scratch_operands = 0 : i64, tpu.core_type = #tpu.core_type<tc>, window_params = [{transform_indices = @transform_0, window_bounds = array<i64: 32, 64>}, {pipeline_mode = #tpu.pipeline_mode<synchronous>, transform_indices = @transform_1, window_bounds = array<i64: 64, 512>}, {pipeline_mode = #tpu.pipeline_mode<synchronous>, transform_indices = @transform_2, window_bounds = array<i64: 128, 384>}, {pipeline_mode = #tpu.pipeline_mode<synchronous>, transform_indices = @transform_3, window_bounds = array<i64: 2, 128>}, {transform_indices = @transform_4, window_bounds = array<i64: 32, 128>}]} {
    %c0 = arith.constant 0 : index
    %c0_0 = arith.constant 0 : index
    %0 = vector.load %arg1[%c0, %c0_0] : memref<32x64xf32, #tpu.memory_space<vmem>>, vector<32x64xf32>
    %1 = arith.truncf %0 : vector<32x64xf32> to vector<32x64xbf16>
    %2 = tpu.iota {dimensions = array<i32: 0>} : vector<32x128xi32>
    %c16_i32 = arith.constant 16 : i32
    %c0_i32 = arith.constant 0 : i32
    %3 = arith.cmpi eq, %c16_i32, %c0_i32 : i32
    %c1_i32 = arith.constant 1 : i32
    %4 = arith.select %3, %c1_i32, %c16_i32 : i32
    %5 = vector.broadcast %4 : i32 to vector<32x128xi32>
    %6 = arith.remsi %2, %5 : vector<32x128xi32>
    %c0_i32_1 = arith.constant 0 : i32
    %7 = vector.broadcast %c0_i32_1 : i32 to vector<32x128xi32>
    %8 = arith.cmpi ne, %6, %7 : vector<32x128xi32>
    %c0_i32_2 = arith.constant 0 : i32
    %9 = vector.broadcast %c0_i32_2 : i32 to vector<32x128xi32>
    %10 = arith.cmpi slt, %6, %9 : vector<32x128xi32>
    %c0_i32_3 = arith.constant 0 : i32
    %11 = arith.cmpi slt, %4, %c0_i32_3 : i32
    %12 = vector.broadcast %11 : i1 to vector<32x128xi1>
    %13 = vector.broadcast %12 : vector<32x128xi1> to vector<32x128xi1>
    %14 = arith.xori %10, %13 : vector<32x128xi1>
    %15 = arith.andi %14, %8 : vector<32x128xi1>
    %16 = vector.broadcast %4 : i32 to vector<32x128xi32>
    %17 = arith.addi %6, %16 : vector<32x128xi32>
    %18 = arith.select %15, %17, %6 : vector<32x128xi1>, vector<32x128xi32>
    %c0_i32_4 = arith.constant 0 : i32
    %19 = vector.broadcast %c0_i32_4 : i32 to vector<32x128xi32>
    %20 = arith.cmpi eq, %18, %19 : vector<32x128xi32>
    %c15_i32 = arith.constant 15 : i32
    %21 = vector.broadcast %c15_i32 : i32 to vector<32x128xi32>
    %22 = arith.cmpi eq, %18, %21 : vector<32x128xi32>
    %c0_5 = arith.constant 0 : index
    %c0_6 = arith.constant 0 : index
    %23 = vector.load %arg2[%c0_5, %c0_6] : memref<64x512xbf16, #tpu.memory_space<vmem>>, vector<64x512xbf16>
    %cst = arith.constant dense<0.000000e+00> : vector<32x512xf32>
    %24 = tpu.matmul %1, %23, %cst {dimension_numbers = #tpu.dot_dimension_numbers<[1], [0], [0], [1], [0, 0, 1, 1], [], []>} : vector<32x64xbf16>, vector<64x512xbf16>, vector<32x512xf32> -> vector<32x512xf32>
    %25 = vector.extract_strided_slice %24 {offsets = [0, 0], sizes = [32, 128], strides = [1, 1]} : vector<32x512xf32> to vector<32x128xf32>
    %26 = vector.extract_strided_slice %24 {offsets = [0, 128], sizes = [32, 128], strides = [1, 1]} : vector<32x512xf32> to vector<32x128xf32>
    %27 = vector.extract_strided_slice %24 {offsets = [0, 256], sizes = [32, 128], strides = [1, 1]} : vector<32x512xf32> to vector<32x128xf32>
    %28 = vector.extract_strided_slice %24 {offsets = [0, 384], sizes = [32, 128], strides = [1, 1]} : vector<32x512xf32> to vector<32x128xf32>
    %c1_i32_7 = arith.constant 1 : i32
    %29 = tpu.dynamic_rotate %25 by %c1_i32_7 dim 0 : vector<32x128xf32>, i32 -> vector<32x128xf32>
    %cst_8 = arith.constant 0.000000e+00 : f32
    %30 = vector.broadcast %cst_8 : f32 to vector<32x128xf32>
    %31 = arith.select %20, %30, %29 : vector<32x128xi1>, vector<32x128xf32>
    %32 = arith.addf %26, %31 : vector<32x128xf32>
    %c31_i32 = arith.constant 31 : i32
    %33 = tpu.dynamic_rotate %27 by %c31_i32 dim 0 : vector<32x128xf32>, i32 -> vector<32x128xf32>
    %cst_9 = arith.constant 0.000000e+00 : f32
    %34 = vector.broadcast %cst_9 : f32 to vector<32x128xf32>
    %35 = arith.select %22, %34, %33 : vector<32x128xi1>, vector<32x128xf32>
    %36 = arith.addf %32, %35 : vector<32x128xf32>
    %c0_10 = arith.constant 0 : index
    %c0_11 = arith.constant 0 : index
    %37 = vector.load %arg4[%c0_10, %c0_11] : memref<2x128xf32, #tpu.memory_space<vmem>>, vector<1x128xf32>
    %38 = vector.broadcast %37 : vector<1x128xf32> to vector<32x128xf32>
    %39 = arith.addf %36, %38 : vector<32x128xf32>
    %cst_12 = arith.constant 0.000000e+00 : f32
    %40 = vector.broadcast %cst_12 : f32 to vector<32x128xf32>
    %41 = arith.maximumf %39, %40 : vector<32x128xf32>
    %42 = arith.truncf %41 : vector<32x128xf32> to vector<32x128xbf16>
    %c0_13 = arith.constant 0 : index
    %c0_14 = arith.constant 0 : index
    %43 = vector.load %arg3[%c0_13, %c0_14] : memref<128x384xbf16, #tpu.memory_space<vmem>>, vector<128x384xbf16>
    %cst_15 = arith.constant dense<0.000000e+00> : vector<32x384xf32>
    %44 = tpu.matmul %42, %43, %cst_15 {dimension_numbers = #tpu.dot_dimension_numbers<[1], [0], [0], [1], [0, 0, 1, 1], [], []>} : vector<32x128xbf16>, vector<128x384xbf16>, vector<32x384xf32> -> vector<32x384xf32>
    %45 = vector.extract_strided_slice %44 {offsets = [0, 0], sizes = [32, 128], strides = [1, 1]} : vector<32x384xf32> to vector<32x128xf32>
    %46 = vector.extract_strided_slice %44 {offsets = [0, 128], sizes = [32, 128], strides = [1, 1]} : vector<32x384xf32> to vector<32x128xf32>
    %47 = vector.extract_strided_slice %44 {offsets = [0, 256], sizes = [32, 128], strides = [1, 1]} : vector<32x384xf32> to vector<32x128xf32>
    %c1_i32_16 = arith.constant 1 : i32
    %48 = tpu.dynamic_rotate %45 by %c1_i32_16 dim 0 : vector<32x128xf32>, i32 -> vector<32x128xf32>
    %cst_17 = arith.constant 0.000000e+00 : f32
    %49 = vector.broadcast %cst_17 : f32 to vector<32x128xf32>
    %50 = arith.select %20, %49, %48 : vector<32x128xi1>, vector<32x128xf32>
    %51 = arith.addf %46, %50 : vector<32x128xf32>
    %c31_i32_18 = arith.constant 31 : i32
    %52 = tpu.dynamic_rotate %47 by %c31_i32_18 dim 0 : vector<32x128xf32>, i32 -> vector<32x128xf32>
    %cst_19 = arith.constant 0.000000e+00 : f32
    %53 = vector.broadcast %cst_19 : f32 to vector<32x128xf32>
    %54 = arith.select %22, %53, %52 : vector<32x128xi1>, vector<32x128xf32>
    %55 = arith.addf %51, %54 : vector<32x128xf32>
    %56 = arith.addf %55, %28 : vector<32x128xf32>
    %c1 = arith.constant 1 : index
    %c0_20 = arith.constant 0 : index
    %57 = vector.load %arg4[%c1, %c0_20] : memref<2x128xf32, #tpu.memory_space<vmem>>, vector<1x128xf32>
    %58 = vector.broadcast %57 : vector<1x128xf32> to vector<32x128xf32>
    %59 = arith.addf %56, %58 : vector<32x128xf32>
    %cst_21 = arith.constant 0.000000e+00 : f32
    %60 = vector.broadcast %cst_21 : f32 to vector<32x128xf32>
    %61 = arith.maximumf %59, %60 : vector<32x128xf32>
    %c0_22 = arith.constant 0 : index
    %c0_23 = arith.constant 0 : index
    %62 = vector.load %arg5[%c0_22, %c0_23] : memref<32x128xf32, #tpu.memory_space<vmem>>, vector<32x128xf32>
    tpu.vector_store %arg5[%c0_22, %c0_23], %61 {strides = array<i32>} : memref<32x128xf32, #tpu.memory_space<vmem>>, vector<32x128xf32>,
    return
  }
  func.func @transform_0(%arg0: i32) -> (i32, i32) {
    %c0_i32 = arith.constant 0 : i32
    %c0_i32_0 = arith.constant 0 : i32
    return %arg0, %c0_i32 : i32, i32
  }
  func.func @transform_1(%arg0: i32) -> (i32, i32) {
    %c0_i32 = arith.constant 0 : i32
    %c0_i32_0 = arith.constant 0 : i32
    %c0_i32_1 = arith.constant 0 : i32
    return %c0_i32, %c0_i32_0 : i32, i32
  }
  func.func @transform_2(%arg0: i32) -> (i32, i32) {
    %c0_i32 = arith.constant 0 : i32
    %c0_i32_0 = arith.constant 0 : i32
    %c0_i32_1 = arith.constant 0 : i32
    return %c0_i32, %c0_i32_0 : i32, i32
  }
  func.func @transform_3(%arg0: i32) -> (i32, i32) {
    %c0_i32 = arith.constant 0 : i32
    %c0_i32_0 = arith.constant 0 : i32
    %c0_i32_1 = arith.constant 0 : i32
    return %c0_i32, %c0_i32_0 : i32, i32
  }
  func.func @transform_4(%arg0: i32) -> (i32, i32) {
    %c0_i32 = arith.constant 0 : i32
    %c0_i32_0 = arith.constant 0 : i32
    return %arg0, %c0_i32 : i32, i32
  }
}

</mosaic_0001>

<llo_original>
// kernel: residual_block_forward.1
$region0: #{residual_block_forward.1}
  #allocation0 [shape = 'u32[]', space=smem, size = 0x4, offset = 0x4, fixed_abs, tag = 'smem constant byte address 0x4 - core index']
  #allocation1 [shape = 'u32[144,128]{1,0:T(1,128)}', space=vmem, size = 0x12000, scoped, tag = 'internal scratch']
  %s0 = inlined_call_operand.vmem [shape: f32[32,64], index: 0, kind: input, shape index: {}]
  %s1 = inlined_call_operand.vmem [shape: bf16[64,512], index: 1, kind: input, shape index: {}]
  %s2 = inlined_call_operand.vmem [shape: bf16[128,384], index: 2, kind: input, shape index: {}]
  %s3 = inlined_call_operand.vmem [shape: f32[2,128], index: 3, kind: input, shape index: {}]
  %s4 = inlined_call_operand.vmem [shape: f32[32,128], index: 4, kind: output, shape index: {}]
  %s5 = sld [smem:[#allocation0]]
  $region26: #{residual_block_forward.1} parent=0
    _
  %s7 = ssub.s32 1, %s5
  %s8 = scalar_select 0, %s7, %s5
  // Predicated region
  $region2: #{residual_block_forward.1} parent=0 // pred_check
    _
  $region3: #{residual_block_forward.1} parent=0 // pred_check_branch
    %10 = sbr.rel (0) target = $region5
  $region4: #{residual_block_forward.1} parent=0 // pred_region
    _
  $region5: #{residual_block_forward.1} parent=0 // pred_fallthru
    _
  // Predicated region
  $region6: #{residual_block_forward.1} parent=0 // pred_check
    _
  $region7: #{residual_block_forward.1} parent=0 // pred_check_branch
    %12 = sbr.rel (0) target = $region9
  $region8: #{residual_block_forward.1} parent=0 // pred_region
    _
  $region9: #{residual_block_forward.1} parent=0 // pred_fallthru
    _
  // Predicated region
  $region10: #{residual_block_forward.1} parent=0 // pred_check
    _
  $region11: #{residual_block_forward.1} parent=0 // pred_check_branch
    %14 = sbr.rel (0) target = $region13
  $region12: #{residual_block_forward.1} parent=0 // pred_region
    _
  $region13: #{residual_block_forward.1} parent=0 // pred_fallthru
    _
  // Predicated region
  $region14: #{residual_block_forward.1} parent=0 // pred_check
    _
  $region15: #{residual_block_forward.1} parent=0 // pred_check_branch
    %16 = sbr.rel (0) target = $region17
  $region16: #{residual_block_forward.1} parent=0 // pred_region
    _
  $region17: #{residual_block_forward.1} parent=0 // pred_fallthru
    _
  %v18 = vld [vmem:[%s0] sm:$0xff]
  %v19 = vld [vmem:[%s0 + $0x8] sm:$0xff]
  %v20 = vld [vmem:[%s0 + $0x10] sm:$0xff]
  %v21 = vld [vmem:[%s0 + $0x18] sm:$0xff]
  %v22 = vpack.c.bf16 %v19, %v18
  %v23 = vpack.c.bf16 %v21, %v20
  %v24 = vlaneseq
  %v25 = vshrl.u32 %v24, 7
  %v26 = vadd.s32 %v25, 8
  %v27 = vadd.s32 %v25, 16
  %v28 = vadd.s32 %v25, 24
  %vm29 = vcmp.lt.s32.totalorder %v25, 0
  %v30 = vsub.s32 0, %v25
  %v31 = vsel %vm29, %v30, %v25
  %v32 = vshrl.u32 %v31, 4
  %v33 = vand.u32 %v31, 15
  %v34 = vsub.s32 0, %v33
  %v35 = vsel %vm29, %v34, %v33
  %vm36 = vcmp.lt.s32.totalorder %v26, 0
  %v37 = vsub.s32 0, %v26
  %v38 = vsel %vm36, %v37, %v26
  %v39 = vshrl.u32 %v38, 4
  %v40 = vand.u32 %v38, 15
  %v41 = vsub.s32 0, %v40
  %v42 = vsel %vm36, %v41, %v40
  %vm43 = vcmp.lt.s32.totalorder %v27, 0
  %v44 = vsub.s32 0, %v27
  %v45 = vsel %vm43, %v44, %v27
  %v46 = vshrl.u32 %v45, 4
  %v47 = vand.u32 %v45, 15
  %v48 = vsub.s32 0, %v47
  %v49 = vsel %vm43, %v48, %v47
  %vm50 = vcmp.lt.s32.totalorder %v28, 0
  %v51 = vsub.s32 0, %v28
  %v52 = vsel %vm50, %v51, %v28
  %v53 = vshrl.u32 %v52, 4
  %v54 = vand.u32 %v52, 15
  %v55 = vsub.s32 0, %v54
  %v56 = vsel %vm50, %v55, %v54
  %vm57 = vcmp.ne.s32.totalorder %v35, 0
  %vm58 = vcmp.ne.s32.totalorder %v42, 0
  %vm59 = vcmp.ne.s32.totalorder %v49, 0
  %vm60 = vcmp.ne.s32.totalorder %v56, 0
  %vm61 = vcmp.lt.s32.totalorder %v35, 0
  %vm62 = vcmp.lt.s32.totalorder %v42, 0
  %vm63 = vcmp.lt.s32.totalorder %v49, 0
  %vm64 = vcmp.lt.s32.totalorder %v56, 0
  %vm65 = vmand %vm61, %vm57
  %vm66 = vmand %vm62, %vm58
  %vm67 = vmand %vm63, %vm59
  %vm68 = vmand %vm64, %vm60
  %v69 = vadd.s32 %v35, 16
  %v70 = vadd.s32 %v42, 16
  %v71 = vadd.s32 %v49, 16
  %v72 = vadd.s32 %v56, 16
  %v73 = vsel %vm65, %v69, %v35
  %v74 = vsel %vm66, %v70, %v42
  %v75 = vsel %vm67, %v71, %v49
  %v76 = vsel %vm68, %v72, %v56
  %vm77 = vcmp.eq.s32.totalorder %v73, 0
  %vm78 = vcmp.eq.s32.totalorder %v74, 0
  %vm79 = vcmp.eq.s32.totalorder %v75, 0
  %vm80 = vcmp.eq.s32.totalorder %v76, 0
  %vm81 = vcmp.eq.s32.totalorder %v73, 15
  %vm82 = vcmp.eq.s32.totalorder %v74, 15
  %vm83 = vcmp.eq.s32.totalorder %v75, 15
  %vm84 = vcmp.eq.s32.totalorder %v76, 15
  %v85 = vld [vmem:[%s1] sm:$0xff]
  %v86 = vld [vmem:[%s1 + $0x8] sm:$0xff]
  %v87 = vld [vmem:[%s1 + $0x10] sm:$0xff]
  %v88 = vld [vmem:[%s1 + $0x18] sm:$0xff]
  %v89 = vld [vmem:[%s1 + $0x20] sm:$0xff]
  %v90 = vld [vmem:[%s1 + $0x28] sm:$0xff]
  %v91 = vld [vmem:[%s1 + $0x30] sm:$0xff]
  %v92 = vld [vmem:[%s1 + $0x38] sm:$0xff]
  %v93 = vld [vmem:[%s1 + $0x40] sm:$0xff]
  %v94 = vld [vmem:[%s1 + $0x48] sm:$0xff]
  %v95 = vld [vmem:[%s1 + $0x50] sm:$0xff]
  %v96 = vld [vmem:[%s1 + $0x58] sm:$0xff]
  %v97 = vld [vmem:[%s1 + $0x60] sm:$0xff]
  %v98 = vld [vmem:[%s1 + $0x68] sm:$0xff]
  %v99 = vld [vmem:[%s1 + $0x70] sm:$0xff]
  %v100 = vld [vmem:[%s1 + $0x78] sm:$0xff]
  %v117 = vunpack.c.l.b16 %v85
  %v118 = vunpack.c.h.b16 %v85
  %v119 = vunpack.c.l.b16 %v86
  %v120 = vunpack.c.h.b16 %v86
  %v121 = vunpack.c.l.b16 %v87
  %v122 = vunpack.c.h.b16 %v87
  %v123 = vunpack.c.l.b16 %v88
  %v124 = vunpack.c.h.b16 %v88
  %v125 = vunpack.c.l.b16 %v89
  %v126 = vunpack.c.h.b16 %v89
  %v127 = vunpack.c.l.b16 %v90
  %v128 = vunpack.c.h.b16 %v90
  %v129 = vunpack.c.l.b16 %v91
  %v130 = vunpack.c.h.b16 %v91
  %v131 = vunpack.c.l.b16 %v92
  %v132 = vunpack.c.h.b16 %v92
  %v133 = vunpack.c.l.b16 %v93
  %v134 = vunpack.c.h.b16 %v93
  %v135 = vunpack.c.l.b16 %v94
  %v136 = vunpack.c.h.b16 %v94
  %v137 = vunpack.c.l.b16 %v95
  %v138 = vunpack.c.h.b16 %v95
  %v139 = vunpack.c.l.b16 %v96
  %v140 = vunpack.c.h.b16 %v96
  %v141 = vunpack.c.l.b16 %v97
  %v142 = vunpack.c.h.b16 %v97
  %v143 = vunpack.c.l.b16 %v98
  %v144 = vunpack.c.h.b16 %v98
  %v145 = vunpack.c.l.b16 %v99
  %v146 = vunpack.c.h.b16 %v99
  %v147 = vunpack.c.l.b16 %v100
  %v148 = vunpack.c.h.b16 %v100
  %v149 = vpack.c.b16 %v121, %v117
  %v150 = vpack.c.b16 %v122, %v118
  %v151 = vpack.c.b16 %v123, %v119
  %v152 = vpack.c.b16 %v124, %v120
  %v153 = vpack.c.b16 %v129, %v125
  %v154 = vpack.c.b16 %v130, %v126
  %v155 = vpack.c.b16 %v131, %v127
  %v156 = vpack.c.b16 %v132, %v128
  %v157 = vpack.c.b16 %v137, %v133
  %v158 = vpack.c.b16 %v138, %v134
  %v159 = vpack.c.b16 %v139, %v135
  %v160 = vpack.c.b16 %v140, %v136
  %v161 = vpack.c.b16 %v145, %v141
  %v162 = vpack.c.b16 %v146, %v142
  %v163 = vpack.c.b16 %v147, %v143
  %v164 = vpack.c.b16 %v148, %v144
  %vm181 = vcmask 523264
  %v183 = vsel %vm181, %v22, 0
  %v186 = vsel %vm181, %v23, 0
  %188 = vmatprep.subr.bf16.mxu0 %v150
  %189 = vmatpush1.bf16.msra.mxu0 %v149
  %190 = vmatprep.subr.bf16.mxu0 %v154
  %191 = vmatpush1.bf16.msra.mxu0 %v153
  %192 = vmatprep.subr.bf16.mxu0 %v158
  %193 = vmatpush1.bf16.msra.mxu0 %v157
  %194 = vmatprep.subr.bf16.mxu0 %v162
  %195 = vmatpush1.bf16.msra.mxu0 %v161
  %196 = vmatprep.subr.bf16.mxu0 0
  %197 = vmatpush1.bf16.msra.mxu0 0
  %198 = vmatprep.subr.bf16.mxu0 0
  %199 = vmatpush1.bf16.msra.mxu0 0
  %200 = vmatprep.subr.bf16.mxu0 0
  %201 = vmatpush1.bf16.msra.mxu0 0
  %202 = vmatprep.subr.bf16.mxu0 0
  %203 = vmatpush1.bf16.msra.mxu0 0
  %204 = vmatprep.subr.bf16.mxu0 0
  %205 = vmatpush1.bf16.msra.mxu0 0
  %206 = vmatprep.subr.bf16.mxu0 0
  %207 = vmatpush1.bf16.msra.mxu0 0
  %208 = vmatprep.subr.bf16.mxu0 0
  %209 = vmatpush1.bf16.msra.mxu0 0
  %210 = vmatprep.subr.bf16.mxu0 0
  %211 = vmatpush1.bf16.msra.mxu0 0
  %212 = vmatprep.subr.bf16.mxu0 0
  %213 = vmatpush1.bf16.msra.mxu0 0
  %214 = vmatprep.subr.bf16.mxu0 0
  %215 = vmatpush1.bf16.msra.mxu0 0
  %216 = vmatprep.subr.bf16.mxu0 0
  %217 = vmatpush1.bf16.msra.mxu0 0
  %218 = vmatprep.subr.bf16.mxu0 0
  %219 = vmatpush1.bf16.msra.mxu0 0
  %220 = vmatprep.mubr.bf16.mxu0 0
  %221 = vmatmul.mubr.bf16.gmra.mrb[0].mxu0 %v183
  %v222 = vpop.f32.mrb[0].mxu0
  %v223 = vadd.f32 0.0, %v222
  %v224 = vpop.f32.mrb[0].mxu0
  %v225 = vadd.f32 0.0, %v224
  %v226 = vpop.f32.mrb[0].mxu0
  %v227 = vadd.f32 0.0, %v226
  %v228 = vpop.f32.mrb[0].mxu0
  %v229 = vadd.f32 0.0, %v228
  %230 = vmatprep.mubr.bf16.mxu0 0
  %231 = vmatmul.mubr.bf16.gmra.mrb[0].mxu0 %v186
  %v232 = vpop.f32.mrb[0].mxu0
  %v233 = vadd.f32 0.0, %v232
  %v234 = vpop.f32.mrb[0].mxu0
  %v235 = vadd.f32 0.0, %v234
  %v236 = vpop.f32.mrb[0].mxu0
  %v237 = vadd.f32 0.0, %v236
  %v238 = vpop.f32.mrb[0].mxu0
  %v239 = vadd.f32 0.0, %v238
  %240 = vdwg.mxu0
  %241 = vmatprep.subr.bf16.mxu0 %v152
  %242 = vmatpush1.bf16.msra.mxu0 %v151
  %243 = vmatprep.subr.bf16.mxu0 %v156
  %244 = vmatpush1.bf16.msra.mxu0 %v155
  %245 = vmatprep.subr.bf16.mxu0 %v160
  %246 = vmatpush1.bf16.msra.mxu0 %v159
  %247 = vmatprep.subr.bf16.mxu0 %v164
  %248 = vmatpush1.bf16.msra.mxu0 %v163
  %249 = vmatprep.subr.bf16.mxu0 0
  %250 = vmatpush1.bf16.msra.mxu0 0
  %251 = vmatprep.subr.bf16.mxu0 0
  %252 = vmatpush1.bf16.msra.mxu0 0
  %253 = vmatprep.subr.bf16.mxu0 0
  %254 = vmatpush1.bf16.msra.mxu0 0
  %255 = vmatprep.subr.bf16.mxu0 0
  %256 = vmatpush1.bf16.msra.mxu0 0
  %257 = vmatprep.subr.bf16.mxu0 0
  %258 = vmatpush1.bf16.msra.mxu0 0
  %259 = vmatprep.subr.bf16.mxu0 0
  %260 = vmatpush1.bf16.msra.mxu0 0
  %261 = vmatprep.subr.bf16.mxu0 0
  %262 = vmatpush1.bf16.msra.mxu0 0
  %263 = vmatprep.subr.bf16.mxu0 0
  %264 = vmatpush1.bf16.msra.mxu0 0
  %265 = vmatprep.subr.bf16.mxu0 0
  %266 = vmatpush1.bf16.msra.mxu0 0
  %267 = vmatprep.subr.bf16.mxu0 0
  %268 = vmatpush1.bf16.msra.mxu0 0
  %269 = vmatprep.subr.bf16.mxu0 0
  %270 = vmatpush1.bf16.msra.mxu0 0
  %271 = vmatprep.subr.bf16.mxu0 0
  %272 = vmatpush1.bf16.msra.mxu0 0
  %273 = vmatprep.mubr.bf16.mxu0 0
  %274 = vmatmul.mubr.bf16.gmra.mrb[0].mxu0 %v183
  %v275 = vpop.f32.mrb[0].mxu0
  %v276 = vadd.f32 0.0, %v275
  %v277 = vpop.f32.mrb[0].mxu0
  %v278 = vadd.f32 0.0, %v277
  %v279 = vpop.f32.mrb[0].mxu0
  %v280 = vadd.f32 0.0, %v279
  %v281 = vpop.f32.mrb[0].mxu0
  %v282 = vadd.f32 0.0, %v281
  %283 = vmatprep.mubr.bf16.mxu0 0
  %284 = vmatmul.mubr.bf16.gmra.mrb[0].mxu0 %v186
  %v285 = vpop.f32.mrb[0].mxu0
  %v286 = vadd.f32 0.0, %v285
  %v287 = vpop.f32.mrb[0].mxu0
  %v288 = vadd.f32 0.0, %v287
  %v289 = vpop.f32.mrb[0].mxu0
  %v290 = vadd.f32 0.0, %v289
  %v291 = vpop.f32.mrb[0].mxu0
  %v292 = vadd.f32 0.0, %v291
  %293 = vdwg.mxu0
  %v294 = vrot.slane %v223, 7
  %v295 = vrot.slane %v227, 7
  %v296 = vrot.slane %v233, 7
  %v297 = vrot.slane %v237, 7
  %vm298 = vcmp.lt.s32.totalorder %v25, 1
  %v299 = vsel %vm298, %v296, %v297
  %v300 = vsel %vm298, %v295, %v296
  %v301 = vsel %vm298, %v294, %v295
  %v302 = vsel %vm298, %v297, %v294
  %v303 = vsel %vm77, 0.0, %v302
  %v304 = vsel %vm78, 0.0, %v301
  %v305 = vsel %vm79, 0.0, %v300
  %v306 = vsel %vm80, 0.0, %v299
  %v307 = vadd.f32 %v225, %v303
  %v308 = vadd.f32 %v229, %v304
  %v309 = vadd.f32 %v235, %v305
  %v310 = vadd.f32 %v239, %v306
  %v311 = vrot.slane %v276, 1
  %v312 = vrot.slane %v280, 1
  %v313 = vrot.slane %v286, 1
  %v314 = vrot.slane %v290, 1
  %vm315 = vcmp.lt.s32.totalorder %v25, 7
  %v316 = vsel %vm315, %v313, %v314
  %v317 = vsel %vm315, %v312, %v313
  %v318 = vsel %vm315, %v311, %v312
  %v319 = vsel %vm315, %v314, %v311
  %v320 = vsel %vm81, 0.0, %v318
  %v321 = vsel %vm82, 0.0, %v317
  %v322 = vsel %vm83, 0.0, %v316
  %v323 = vsel %vm84, 0.0, %v319
  %v324 = vadd.f32 %v307, %v320
  %v325 = vadd.f32 %v308, %v321
  %v326 = vadd.f32 %v309, %v322
  %v327 = vadd.f32 %v310, %v323
  %v328 = vld [vmem:[%s3] sm:$0x1]
  %v329 = vlaneseq
  %v330 = vshrl.u32 %v329, 7
  %v331 = vsub.s32 0, %v330
  %v332 = vrot.slane %v328, %v331
  %v333 = vadd.f32 %v324, %v332
  %v334 = vadd.f32 %v325, %v332
  %v335 = vadd.f32 %v326, %v332
  %v336 = vadd.f32 %v327, %v332
  %v337 = vmax.f32 %v333, 0.0
  %v338 = vmax.f32 %v334, 0.0
  %v339 = vmax.f32 %v335, 0.0
  %v340 = vmax.f32 %v336, 0.0
  %v341 = vpack.c.bf16 %v338, %v337
  %v342 = vpack.c.bf16 %v340, %v339
  %v343 = vld [vmem:[%s2] sm:$0xff]
  %v344 = vld [vmem:[%s2 + $0x8] sm:$0xf]
  %v345 = vld [vmem:[%s2 + $0xc] sm:$0xff]
  %v346 = vld [vmem:[%s2 + $0x14] sm:$0xf]
  %v347 = vld [vmem:[%s2 + $0x18] sm:$0xff]
  %v348 = vld [vmem:[%s2 + $0x20] sm:$0xf]
  %v349 = vld [vmem:[%s2 + $0x24] sm:$0xff]
  %v350 = vld [vmem:[%s2 + $0x2c] sm:$0xf]
  %v351 = vld [vmem:[%s2 + $0x30] sm:$0xff]
  %v352 = vld [vmem:[%s2 + $0x38] sm:$0xf]
  %v353 = vld [vmem:[%s2 + $0x3c] sm:$0xff]
  %v354 = vld [vmem:[%s2 + $0x44] sm:$0xf]
  %v355 = vld [vmem:[%s2 + $0x48] sm:$0xff]
  %v356 = vld [vmem:[%s2 + $0x50] sm:$0xf]
  %v357 = vld [vmem:[%s2 + $0x54] sm:$0xff]
  %v358 = vld [vmem:[%s2 + $0x5c] sm:$0xf]
  %v359 = vld [vmem:[%s2 + $0x60] sm:$0xff]
  %v360 = vld [vmem:[%s2 + $0x68] sm:$0xf]
  %v361 = vld [vmem:[%s2 + $0x6c] sm:$0xff]
  %v362 = vld [vmem:[%s2 + $0x74] sm:$0xf]
  %v363 = vld [vmem:[%s2 + $0x78] sm:$0xff]
  %v364 = vld [vmem:[%s2 + $0x80] sm:$0xf]
  %v365 = vld [vmem:[%s2 + $0x84] sm:$0xff]
  %v366 = vld [vmem:[%s2 + $0x8c] sm:$0xf]
  %v367 = vld [vmem:[%s2 + $0x90] sm:$0xff]
  %v368 = vld [vmem:[%s2 + $0x98] sm:$0xf]
  %v369 = vld [vmem:[%s2 + $0x9c] sm:$0xff]
  %v370 = vld [vmem:[%s2 + $0xa4] sm:$0xf]
  %v371 = vld [vmem:[%s2 + $0xa8] sm:$0xff]
  %v372 = vld [vmem:[%s2 + $0xb0] sm:$0xf]
  %v373 = vld [vmem:[%s2 + $0xb4] sm:$0xff]
  %v374 = vld [vmem:[%s2 + $0xbc] sm:$0xf]
  %v407 = vunpack.c.l.b16 %v343
  %v408 = vunpack.c.h.b16 %v343
  %v409 = vunpack.c.l.b16 %v344
  %v410 = vunpack.c.l.b16 %v345
  %v411 = vunpack.c.h.b16 %v345
  %v412 = vunpack.c.l.b16 %v346
  %v413 = vunpack.c.l.b16 %v347
  %v414 = vunpack.c.h.b16 %v347
  %v415 = vunpack.c.l.b16 %v348
  %v416 = vunpack.c.l.b16 %v349
  %v417 = vunpack.c.h.b16 %v349
  %v418 = vunpack.c.l.b16 %v350
  %v419 = vunpack.c.l.b16 %v351
  %v420 = vunpack.c.h.b16 %v351
  %v421 = vunpack.c.l.b16 %v352
  %v422 = vunpack.c.l.b16 %v353
  %v423 = vunpack.c.h.b16 %v353
  %v424 = vunpack.c.l.b16 %v354
  %v425 = vunpack.c.l.b16 %v355
  %v426 = vunpack.c.h.b16 %v355
  %v427 = vunpack.c.l.b16 %v356
  %v428 = vunpack.c.l.b16 %v357
  %v429 = vunpack.c.h.b16 %v357
  %v430 = vunpack.c.l.b16 %v358
  %v431 = vunpack.c.l.b16 %v359
  %v432 = vunpack.c.h.b16 %v359
  %v433 = vunpack.c.l.b16 %v360
  %v434 = vunpack.c.l.b16 %v361
  %v435 = vunpack.c.h.b16 %v361
  %v436 = vunpack.c.l.b16 %v362
  %v437 = vunpack.c.l.b16 %v363
  %v438 = vunpack.c.h.b16 %v363
  %v439 = vunpack.c.l.b16 %v364
  %v440 = vunpack.c.l.b16 %v365
  %v441 = vunpack.c.h.b16 %v365
  %v442 = vunpack.c.l.b16 %v366
  %v443 = vunpack.c.l.b16 %v367
  %v444 = vunpack.c.h.b16 %v367
  %v445 = vunpack.c.l.b16 %v368
  %v446 = vunpack.c.l.b16 %v369
  %v447 = vunpack.c.h.b16 %v369
  %v448 = vunpack.c.l.b16 %v370
  %v449 = vunpack.c.l.b16 %v371
  %v450 = vunpack.c.h.b16 %v371
  %v451 = vunpack.c.l.b16 %v372
  %v452 = vunpack.c.l.b16 %v373
  %v453 = vunpack.c.h.b16 %v373
  %v454 = vunpack.c.l.b16 %v374
  %v455 = vpack.c.b16 %v410, %v407
  %v456 = vpack.c.b16 %v411, %v408
  %v457 = vpack.c.b16 %v412, %v409
  %v458 = vpack.c.b16 %v416, %v413
  %v459 = vpack.c.b16 %v417, %v414
  %v460 = vpack.c.b16 %v418, %v415
  %v461 = vpack.c.b16 %v422, %v419
  %v462 = vpack.c.b16 %v423, %v420
  %v463 = vpack.c.b16 %v424, %v421
  %v464 = vpack.c.b16 %v428, %v425
  %v465 = vpack.c.b16 %v429, %v426
  %v466 = vpack.c.b16 %v430, %v427
  %v467 = vpack.c.b16 %v434, %v431
  %v468 = vpack.c.b16 %v435, %v432
  %v469 = vpack.c.b16 %v436, %v433
  %v470 = vpack.c.b16 %v440, %v437
  %v471 = vpack.c.b16 %v441, %v438
  %v472 = vpack.c.b16 %v442, %v439
  %v473 = vpack.c.b16 %v446, %v443
  %v474 = vpack.c.b16 %v447, %v444
  %v475 = vpack.c.b16 %v448, %v445
  %v476 = vpack.c.b16 %v452, %v449
  %v477 = vpack.c.b16 %v453, %v450
  %v478 = vpack.c.b16 %v454, %v451
  %503 = vmatprep.subr.bf16.mxu0 %v456
  %504 = vmatpush1.bf16.msra.mxu0 %v455
  %505 = vmatprep.subr.bf16.mxu0 %v459
  %506 = vmatpush1.bf16.msra.mxu0 %v458
  %507 = vmatprep.subr.bf16.mxu0 %v462
  %508 = vmatpush1.bf16.msra.mxu0 %v461
  %509 = vmatprep.subr.bf16.mxu0 %v465
  %510 = vmatpush1.bf16.msra.mxu0 %v464
  %511 = vmatprep.subr.bf16.mxu0 %v468
  %512 = vmatpush1.bf16.msra.mxu0 %v467
  %513 = vmatprep.subr.bf16.mxu0 %v471
  %514 = vmatpush1.bf16.msra.mxu0 %v470
  %515 = vmatprep.subr.bf16.mxu0 %v474
  %516 = vmatpush1.bf16.msra.mxu0 %v473
  %517 = vmatprep.subr.bf16.mxu0 %v477
  %518 = vmatpush1.bf16.msra.mxu0 %v476
  %519 = vmatprep.subr.bf16.mxu0 0
  %520 = vmatpush1.bf16.msra.mxu0 0
  %521 = vmatprep.subr.bf16.mxu0 0
  %522 = vmatpush1.bf16.msra.mxu0 0
  %523 = vmatprep.subr.bf16.mxu0 0
  %524 = vmatpush1.bf16.msra.mxu0 0
  %525 = vmatprep.subr.bf16.mxu0 0
  %526 = vmatpush1.bf16.msra.mxu0 0
  %527 = vmatprep.subr.bf16.mxu0 0
  %528 = vmatpush1.bf16.msra.mxu0 0
  %529 = vmatprep.subr.bf16.mxu0 0
  %530 = vmatpush1.bf16.msra.mxu0 0
  %531 = vmatprep.subr.bf16.mxu0 0
  %532 = vmatpush1.bf16.msra.mxu0 0
  %533 = vmatprep.subr.bf16.mxu0 0
  %534 = vmatpush1.bf16.msra.mxu0 0
  %535 = vmatprep.mubr.bf16.mxu0 0
  %536 = vmatmul.mubr.bf16.gmra.mrb[0].mxu0 %v341
  %v537 = vpop.f32.mrb[0].mxu0
  %v538 = vadd.f32 0.0, %v537
  %v539 = vpop.f32.mrb[0].mxu0
  %v540 = vadd.f32 0.0, %v539
  %v541 = vpop.f32.mrb[0].mxu0
  %v542 = vadd.f32 0.0, %v541
  %v543 = vpop.f32.mrb[0].mxu0
  %v544 = vadd.f32 0.0, %v543
  %545 = vmatprep.mubr.bf16.mxu0 0
  %546 = vmatmul.mubr.bf16.gmra.mrb[0].mxu0 %v342
  %v547 = vpop.f32.mrb[0].mxu0
  %v548 = vadd.f32 0.0, %v547
  %v549 = vpop.f32.mrb[0].mxu0
  %v550 = vadd.f32 0.0, %v549
  %v551 = vpop.f32.mrb[0].mxu0
  %v552 = vadd.f32 0.0, %v551
  %v553 = vpop.f32.mrb[0].mxu0
  %v554 = vadd.f32 0.0, %v553
  %555 = vdwg.mxu0
  %556 = vmatprep.subr.bf16.mxu0 0
  %557 = vmatpush1.bf16.msra.mxu0 %v457
  %558 = vmatprep.subr.bf16.mxu0 0
  %559 = vmatpush1.bf16.msra.mxu0 %v460
  %560 = vmatprep.subr.bf16.mxu0 0
  %561 = vmatpush1.bf16.msra.mxu0 %v463
  %562 = vmatprep.subr.bf16.mxu0 0
  %563 = vmatpush1.bf16.msra.mxu0 %v466
  %564 = vmatprep.subr.bf16.mxu0 0
  %565 = vmatpush1.bf16.msra.mxu0 %v469
  %566 = vmatprep.subr.bf16.mxu0 0
  %567 = vmatpush1.bf16.msra.mxu0 %v472
  %568 = vmatprep.subr.bf16.mxu0 0
  %569 = vmatpush1.bf16.msra.mxu0 %v475
  %570 = vmatprep.subr.bf16.mxu0 0
  %571 = vmatpush1.bf16.msra.mxu0 %v478
  %572 = vmatprep.subr.bf16.mxu0 0
  %573 = vmatpush1.bf16.msra.mxu0 0
  %574 = vmatprep.subr.bf16.mxu0 0
  %575 = vmatpush1.bf16.msra.mxu0 0
  %576 = vmatprep.subr.bf16.mxu0 0
  %577 = vmatpush1.bf16.msra.mxu0 0
  %578 = vmatprep.subr.bf16.mxu0 0
  %579 = vmatpush1.bf16.msra.mxu0 0
  %580 = vmatprep.subr.bf16.mxu0 0
  %581 = vmatpush1.bf16.msra.mxu0 0
  %582 = vmatprep.subr.bf16.mxu0 0
  %583 = vmatpush1.bf16.msra.mxu0 0
  %584 = vmatprep.subr.bf16.mxu0 0
  %585 = vmatpush1.bf16.msra.mxu0 0
  %586 = vmatprep.subr.bf16.mxu0 0
  %587 = vmatpush1.bf16.msra.mxu0 0
  %588 = vmatprep.mubr.bf16.mxu0 0
  %589 = vmatmul.mubr.bf16.gmra.mrb[0].mxu0 %v341
  %v590 = vpop.f32.mrb[0].mxu0
  %v591 = vadd.f32 0.0, %v590
  %v592 = vpop.f32.mrb[0].mxu0
  %v593 = vpop.f32.mrb[0].mxu0
  %v594 = vadd.f32 0.0, %v593
  %v595 = vpop.f32.mrb[0].mxu0
  %596 = vmatprep.mubr.bf16.mxu0 0
  %597 = vmatmul.mubr.bf16.gmra.mrb[0].mxu0 %v342
  %v598 = vpop.f32.mrb[0].mxu0
  %v599 = vadd.f32 0.0, %v598
  %v600 = vpop.f32.mrb[0].mxu0
  %v601 = vpop.f32.mrb[0].mxu0
  %v602 = vadd.f32 0.0, %v601
  %v603 = vpop.f32.mrb[0].mxu0
  %604 = vdwg.mxu0
  %v605 = vrot.slane %v538, 7
  %v606 = vrot.slane %v542, 7
  %v607 = vrot.slane %v548, 7
  %v608 = vrot.slane %v552, 7
  %v609 = vsel %vm298, %v607, %v608
  %v610 = vsel %vm298, %v606, %v607
  %v611 = vsel %vm298, %v605, %v606
  %v612 = vsel %vm298, %v608, %v605
  %v613 = vsel %vm77, 0.0, %v612
  %v614 = vsel %vm78, 0.0, %v611
  %v615 = vsel %vm79, 0.0, %v610
  %v616 = vsel %vm80, 0.0, %v609
  %v617 = vadd.f32 %v540, %v613
  %v618 = vadd.f32 %v544, %v614
  %v619 = vadd.f32 %v550, %v615
  %v620 = vadd.f32 %v554, %v616
  %v621 = vrot.slane %v591, 1
  %v622 = vrot.slane %v594, 1
  %v623 = vrot.slane %v599, 1
  %v624 = vrot.slane %v602, 1
  %v625 = vsel %vm315, %v623, %v624
  %v626 = vsel %vm315, %v622, %v623
  %v627 = vsel %vm315, %v621, %v622
  %v628 = vsel %vm315, %v624, %v621
  %v629 = vsel %vm81, 0.0, %v627
  %v630 = vsel %vm82, 0.0, %v626
  %v631 = vsel %vm83, 0.0, %v625
  %v632 = vsel %vm84, 0.0, %v628
  %v633 = vadd.f32 %v617, %v629
  %v634 = vadd.f32 %v618, %v630
  %v635 = vadd.f32 %v619, %v631
  %v636 = vadd.f32 %v620, %v632
  %v637 = vadd.f32 %v633, %v278
  %v638 = vadd.f32 %v634, %v282
  %v639 = vadd.f32 %v635, %v288
  %v640 = vadd.f32 %v636, %v292
  %v641 = vld [vmem:[%s3 + $0x1] sm:$0x1]
  %v642 = vlaneseq
  %v643 = vshrl.u32 %v642, 7
  %v644 = vsub.s32 0, %v643
  %v645 = vrot.slane %v641, %v644
  %v646 = vadd.f32 %v637, %v645
  %v647 = vadd.f32 %v638, %v645
  %v648 = vadd.f32 %v639, %v645
  %v649 = vadd.f32 %v640, %v645
  %v650 = vmax.f32 %v646, 0.0
  %v651 = vmax.f32 %v647, 0.0
  %v652 = vmax.f32 %v648, 0.0
  %v653 = vmax.f32 %v649, 0.0
  %654 = vst [vmem:[%s4] sm:$0xff] %v650
  %655 = vst [vmem:[%s4 + $0x8] sm:$0xff] %v651
  %656 = vst [vmem:[%s4 + $0x10] sm:$0xff] %v652
  %657 = vst [vmem:[%s4 + $0x18] sm:$0xff] %v653
  // Predicated region
  $region18: #{residual_block_forward.1} parent=0 // pred_check
    _
  $region19: #{residual_block_forward.1} parent=0 // pred_check_branch
    %659 = sbr.rel (0) target = $region21
  $region20: #{residual_block_forward.1} parent=0 // pred_region
    _
  $region21: #{residual_block_forward.1} parent=0 // pred_fallthru
    _
  // Predicated region
  $region22: #{residual_block_forward.1} parent=0 // pred_check
    _
  $region23: #{residual_block_forward.1} parent=0 // pred_check_branch
    %661 = sbr.rel (0) target = $region25
  $region24: #{residual_block_forward.1} parent=0 // pred_region
    _
  $region25: #{residual_block_forward.1} parent=0 // pred_fallthru
    _

</llo_original>
